<compile_context>
chip_gen: v7x
topology: tpu7x:2x2x1
jax: 0.10.0
libtpu: 0.0.40
codegen_flags: <defaults>
</compile_context>

<pallas_src>
import jax
import jax.numpy as jnp
from jax.experimental import pallas as pl
from jax.experimental.pallas import tpu as pltpu

# Small, self-consistent shapes (match the module's feature sizes exactly).
B, T, F = 2, 8, 1280      # batch, time steps, backbone feature dim
DV, DA = 512, 128         # WV output dim, attention hidden dim


def _head_kernel(x_ref, w1_w_ref, w1_b_ref, v_wt_ref, w_fused_ref,
                 v_b_ref, fused_b_ref, o_ref):
    bt, _ = x_ref.shape
    b = o_ref.shape[0]
    t = bt // b
    xb = x_ref[...]                                                     # (B*T, 1280) bf16

    # score = Sigmoid(V(Tanh(W1(x)))) : MXU matmul (bf16 in, fp32 accum), then
    # V (128 -> 1) as a VPU multiply + lane reduce instead of a 1-lane MXU matmul.
    h = jnp.tanh(jnp.dot(xb, w1_w_ref[...],
                         preferred_element_type=jnp.float32) + w1_b_ref[...])  # (B*T,128)
    logit = jnp.sum(h * v_wt_ref[...], axis=-1, keepdims=True) + v_b_ref[0, 0]
    score = jax.nn.sigmoid(logit)                                       # (B*T, 1) fp32

    # Folded per-row value projection: p_t = x_t . (Wv @ Wp)  (VPU mul + lane reduce).
    p = jnp.sum(xb.astype(jnp.float32) * w_fused_ref[...],
                axis=-1, keepdims=True)                                 # (B*T, 1) fp32

    # out_b = (sum_t score_t * p_t) / (sum_t score_t) + (bv @ Wp + bp)  -- exact divide,
    # so the folded bias is exact (no reliance on sum_t(attn) == 1 numerics).
    s_bt = score.reshape(b, t)                                          # tiny reshapes
    p_bt = p.reshape(b, t)
    num = jnp.sum(s_bt * p_bt, axis=1, keepdims=True)
    den = jnp.sum(s_bt, axis=1, keepdims=True)
    o_ref[...] = num / den + fused_b_ref[0, 0]                          # (B, 1)


def prepare_params(params):
    """One-time weight prep: fold Wv@Wp, cast W1 to bf16, transpose vectors."""
    wv_w, wv_b, w1_w, w1_b, v_w, v_b, p_w, p_b = params
    w_fused = (wv_w @ p_w).T                       # (1, 1280) fp32 — Wv @ Wp, folded
    fused_b = wv_b @ p_w + p_b                     # (1, 1)    fp32 — bv @ Wp + bp
    return (w1_w.astype(jnp.bfloat16),             # (1280, 128) bf16
            w1_b,                                  # (1, 128)    fp32
            v_w.T,                                 # (1, 128)    fp32
            w_fused,                               # (1, 1280)   fp32
            v_b,                                   # (1, 1)      fp32 -> SMEM scalar
            fused_b)                               # (1, 1)      fp32 -> SMEM scalar


@jax.jit
def shapenet_graphclass_head(x, prepped):
    w1_w, w1_b, v_wt, w_fused, v_b, fused_b = prepped
    b, t, f = x.shape
    # Flatten + cast at the producer (wrapper): no in-kernel relayout of x.
    x_flat = x.reshape(b * t, f).astype(jnp.bfloat16)

    vmem = pl.BlockSpec(memory_space=pltpu.MemorySpace.VMEM)
    smem = pl.BlockSpec(memory_space=pltpu.MemorySpace.SMEM)

    flops = 2 * b * t * f * DA + 2 * b * t * (f + DA)       # matmul + value/V lane dots
    bytes_accessed = (x_flat.size * 2 + w1_w.size * 2 + w1_b.size * 4
                      + v_wt.size * 4 + w_fused.size * 4 + 2 * 4 + b * 4)
    transcendentals = b * t * (DA + 1)                      # tanh + sigmoid

    return pl.pallas_call(
        _head_kernel,
        out_shape=jax.ShapeDtypeStruct((b, 1), jnp.float32),
        in_specs=[vmem, vmem, vmem, vmem, vmem, smem, smem],
        out_specs=vmem,
        cost_estimate=pl.CostEstimate(flops=flops,
                                      bytes_accessed=bytes_accessed,
                                      transcendentals=transcendentals),
    )(x_flat, w1_w, w1_b, v_wt, w_fused, v_b, fused_b)


def init_params(key):
    """Deterministic PyTorch-Linear-style init; weights stored as (in, out)."""
    ks = jax.random.split(key, 8)

    def lin(kw, kb, fan_in, fan_out):
        bound = 1.0 / (fan_in ** 0.5)
        w = jax.random.uniform(kw, (fan_in, fan_out), jnp.float32, -bound, bound)
        b = jax.random.uniform(kb, (1, fan_out), jnp.float32, -bound, bound)
        return w, b

    wv_w, wv_b = lin(ks[0], ks[1], F, DV)     # self.WV: 1280 -> 512
    w1_w, w1_b = lin(ks[2], ks[3], F, DA)     # Attention.W1: 1280 -> 128
    v_w, v_b = lin(ks[4], ks[5], DA, 1)       # Attention.V: 128 -> 1
    p_w, p_b = lin(ks[6], ks[7], DV, 1)       # self.Prediction: 512 -> 1
    return (wv_w, wv_b, w1_w, w1_b, v_w, v_b, p_w, p_b)


def _reference(x, params):
    """Pure-JAX fp32 replica of the PyTorch head (unfolded), for correctness checking."""
    wv_w, wv_b, w1_w, w1_b, v_w, v_b, p_w, p_b = params
    xv = x @ wv_w + wv_b                                           # (B, T, 512)
    score = jax.nn.sigmoid(jnp.tanh(x @ w1_w + w1_b) @ v_w + v_b)  # (B, T, 1)
    attn = score / jnp.sum(score, axis=1, keepdims=True)
    ctx = jnp.sum(attn * xv, axis=1)                               # (B, 512)
    return ctx @ p_w + p_b                                         # (B, 1)


if __name__ == "__main__":
    key = jax.random.PRNGKey(0)
    kx, kp = jax.random.split(key)
    x = jax.random.normal(kx, (B, T, F), dtype=jnp.float32)
    params = init_params(kp)
    prepped = prepare_params(params)

    out = shapenet_graphclass_head(x, prepped)
    out = jax.block_until_ready(out)

    ref = _reference(x, params)
    assert out.shape == (B, 1), out.shape
    assert bool(jnp.all(jnp.isfinite(out)))
    # bf16 x + bf16 W1 on the MXU (fp32 accum) vs fp32 reference => loose-ish tolerance.
    assert jnp.allclose(out, ref, rtol=2e-2, atol=3e-3), (out, ref)
    print("KERNEL_OK")
</pallas_src>

<mosaic_0001>
module attributes {stable_mosaic.version = 11 : i64} {
  func.func @_head_kernel(%arg0: memref<16x1280xbf16, #tpu.memory_space<vmem>>, %arg1: memref<1280x128xbf16, #tpu.memory_space<vmem>>, %arg2: memref<1x128xf32, #tpu.memory_space<vmem>>, %arg3: memref<1x128xf32, #tpu.memory_space<vmem>>, %arg4: memref<1x1280xf32, #tpu.memory_space<vmem>>, %arg5: memref<1x1xf32, #tpu.memory_space<smem>>, %arg6: memref<1x1xf32, #tpu.memory_space<smem>>, %arg7: memref<2x1xf32, #tpu.memory_space<vmem>>) attributes {dimension_semantics = [], scalar_prefetch = 0 : i64, scratch_operands = 0 : i64, tpu.core_type = #tpu.core_type<tc>} {
    %c0 = arith.constant 0 : index
    %c0_0 = arith.constant 0 : index
    %0 = vector.load %arg0[%c0, %c0_0] : memref<16x1280xbf16, #tpu.memory_space<vmem>>, vector<16x1280xbf16>
    %c0_1 = arith.constant 0 : index
    %c0_2 = arith.constant 0 : index
    %1 = vector.load %arg1[%c0_1, %c0_2] : memref<1280x128xbf16, #tpu.memory_space<vmem>>, vector<1280x128xbf16>
    %cst = arith.constant dense<0.000000e+00> : vector<16x128xf32>
    %2 = tpu.matmul %0, %1, %cst {dimension_numbers = #tpu.dot_dimension_numbers<[1], [0], [0], [1], [0, 0, 1, 1], [], []>} : vector<16x1280xbf16>, vector<1280x128xbf16>, vector<16x128xf32> -> vector<16x128xf32>
    %c0_3 = arith.constant 0 : index
    %c0_4 = arith.constant 0 : index
    %3 = vector.load %arg2[%c0_3, %c0_4] : memref<1x128xf32, #tpu.memory_space<vmem>>, vector<1x128xf32>
    %4 = vector.broadcast %3 : vector<1x128xf32> to vector<16x128xf32>
    %5 = arith.addf %2, %4 : vector<16x128xf32>
    %6 = math.tanh %5 : vector<16x128xf32>
    %c0_5 = arith.constant 0 : index
    %c0_6 = arith.constant 0 : index
    %7 = vector.load %arg3[%c0_5, %c0_6] : memref<1x128xf32, #tpu.memory_space<vmem>>, vector<1x128xf32>
    %8 = vector.broadcast %7 : vector<1x128xf32> to vector<16x128xf32>
    %9 = arith.mulf %6, %8 : vector<16x128xf32>
    %cst_7 = arith.constant dense<0.000000e+00> : vector<16xf32>
    %10 = vector.multi_reduction <add>, %9, %cst_7 [1] : vector<16x128xf32> to vector<16xf32>
    %11 = vector.shape_cast %10 : vector<16xf32> to vector<16x1xf32>
    %c0_8 = arith.constant 0 : index
    %c0_9 = arith.constant 0 : index
    %12 = memref.load %arg5[%c0_8, %c0_9] : memref<1x1xf32, #tpu.memory_space<smem>>
    %13 = vector.broadcast %12 : f32 to vector<16x1xf32>
    %14 = arith.addf %11, %13 : vector<16x1xf32>
    %15 = arith.negf %14 : vector<16x1xf32>
    %16 = math.exp %15 : vector<16x1xf32>
    %cst_10 = arith.constant 1.000000e+00 : f32
    %17 = vector.broadcast %cst_10 : f32 to vector<16x1xf32>
    %18 = arith.addf %17, %16 : vector<16x1xf32>
    %19 = arith.divf %17, %18 : vector<16x1xf32>
    %20 = arith.extf %0 : vector<16x1280xbf16> to vector<16x1280xf32>
    %c0_11 = arith.constant 0 : index
    %c0_12 = arith.constant 0 : index
    %21 = vector.load %arg4[%c0_11, %c0_12] : memref<1x1280xf32, #tpu.memory_space<vmem>>, vector<1x1280xf32>
    %22 = vector.broadcast %21 : vector<1x1280xf32> to vector<16x1280xf32>
    %23 = arith.mulf %20, %22 : vector<16x1280xf32>
    %cst_13 = arith.constant dense<0.000000e+00> : vector<16xf32>
    %24 = vector.multi_reduction <add>, %23, %cst_13 [1] : vector<16x1280xf32> to vector<16xf32>
    %25 = vector.shape_cast %24 : vector<16xf32> to vector<16x1xf32>
    %26 = vector.shape_cast %19 : vector<16x1xf32> to vector<2x8xf32>
    %27 = vector.shape_cast %25 : vector<16x1xf32> to vector<2x8xf32>
    %28 = arith.mulf %26, %27 : vector<2x8xf32>
    %cst_14 = arith.constant dense<0.000000e+00> : vector<2xf32>
    %29 = vector.multi_reduction <add>, %28, %cst_14 [1] : vector<2x8xf32> to vector<2xf32>
    %30 = vector.shape_cast %29 : vector<2xf32> to vector<2x1xf32>
    %cst_15 = arith.constant dense<0.000000e+00> : vector<2xf32>
    %31 = vector.multi_reduction <add>, %26, %cst_15 [1] : vector<2x8xf32> to vector<2xf32>
    %32 = vector.shape_cast %31 : vector<2xf32> to vector<2x1xf32>
    %33 = arith.divf %30, %32 : vector<2x1xf32>
    %c0_16 = arith.constant 0 : index
    %c0_17 = arith.constant 0 : index
    %34 = memref.load %arg6[%c0_16, %c0_17] : memref<1x1xf32, #tpu.memory_space<smem>>
    %35 = vector.broadcast %34 : f32 to vector<2x1xf32>
    %36 = arith.addf %33, %35 : vector<2x1xf32>
    %c0_18 = arith.constant 0 : index
    %c0_19 = arith.constant 0 : index
    %37 = vector.load %arg7[%c0_18, %c0_19] : memref<2x1xf32, #tpu.memory_space<vmem>>, vector<2x1xf32>
    tpu.vector_store %arg7[%c0_18, %c0_19], %36 {strides = array<i32>} : memref<2x1xf32, #tpu.memory_space<vmem>>, vector<2x1xf32>,
    return
  }
}

</mosaic_0001>

<llo_original>
// kernel: shapenet_graphclass_head.1
$region0: #{shapenet_graphclass_head.1}
  #allocation0 [shape = 'u32[]', space=smem, size = 0x4, offset = 0x4, fixed_abs, tag = 'smem constant byte address 0x4 - core index']
  #allocation1 [shape = 'u32[144,128]{1,0:T(1,128)}', space=vmem, size = 0x12000, scoped, tag = 'internal scratch']
  #allocation2 [shape = 'f32[1,1]{1,0:T(1,128)S(6)}', space=smem, size = 0x200, scoped, tag = 'scoped memory for shapenet_graphclass_head.1']
  #allocation3 [shape = 'f32[1,1]{1,0:T(1,128)S(6)}', space=smem, size = 0x200, scoped, tag = 'scoped memory for shapenet_graphclass_head.1']
  %s0 = inlined_call_operand.vmem [shape: bf16[16,1280], index: 0, kind: input, shape index: {}]
  %s1 = inlined_call_operand.hbm [shape: bf16[1280,128], index: 1, kind: input, shape index: {}]
  %s2 = inlined_call_operand.vmem [shape: f32[1,128], index: 2, kind: input, shape index: {}]
  %s3 = inlined_call_operand.vmem [shape: f32[1,128], index: 3, kind: input, shape index: {}]
  %s4 = inlined_call_operand.vmem [shape: f32[1,1280], index: 4, kind: input, shape index: {}]
  %s5 = inlined_call_operand.<no memory space> [shape: f32[1,1], index: 5, kind: input, shape index: {}]
  %s6 = inlined_call_operand.<no memory space> [shape: f32[1,1], index: 6, kind: input, shape index: {}]
  %s7 = inlined_call_operand.vmem [shape: f32[2,1], index: 7, kind: output, shape index: {}]
  %s8 = sld [smem:[#allocation0]]
  $region42: #{shapenet_graphclass_head.1} parent=0
    _
  %s10 = ssub.s32 1, %s8
  %s11 = scalar_select 0, %s10, %s8
  %12 = sst [smem:[#allocation2]] %s5
  %13 = sst [smem:[#allocation3]] %s6
  $region1: #{shapenet_graphclass_head.1} parent=0
    #allocation4 [shape = 'u8[327680]{0}', space=vmem, size = 0x50000, scoped, tag = 'input window, operand 1, single buffered']
    #allocation5 [shape = 's32[1]{0}', space=sflag, size = 0x4, scoped, tag = 'scoped memory for shapenet_graphclass_head.1']
    %14 = vsyncpa [#allocation5], 0
    // Predicated region
    $region2: #{shapenet_graphclass_head.1} parent=1 // pred_check
      _
    $region3: #{shapenet_graphclass_head.1} parent=1 // pred_check_branch
      %16 = sbr.rel (0) target = $region5
    $region4: #{shapenet_graphclass_head.1} parent=1 // pred_region
      _
    $region5: #{shapenet_graphclass_head.1} parent=1 // pred_fallthru
      _
    // Predicated region
    $region6: #{shapenet_graphclass_head.1} parent=1 // pred_check
      _
    $region7: #{shapenet_graphclass_head.1} parent=1 // pred_check_branch
      %18 = sbr.rel (0) target = $region9
    $region8: #{shapenet_graphclass_head.1} parent=1 // pred_region
      %s20 = ssub.s32 10240, 10240
      %21 = vsyncadd [#allocation5], %s20
      %s22 = sshll.u32 [#allocation4], 4
      %s23 = int_to_ptr.vmem [resolvable:$true] %s22
      %28 = dma.hbm_to_vmem [thread:$0]  %s1, 10240, %s23, [#allocation5], 64, 64, 4
    $region9: #{shapenet_graphclass_head.1} parent=1 // pred_fallthru
      _
    // Predicated region
    $region10: #{shapenet_graphclass_head.1} parent=1 // pred_check
      _
    $region11: #{shapenet_graphclass_head.1} parent=1 // pred_check_branch
      %30 = sbr.rel (0) target = $region13
    $region12: #{shapenet_graphclass_head.1} parent=1 // pred_region
      _
    $region13: #{shapenet_graphclass_head.1} parent=1 // pred_fallthru
      _
    // Predicated region
    $region14: #{shapenet_graphclass_head.1} parent=1 // pred_check
      _
    $region15: #{shapenet_graphclass_head.1} parent=1 // pred_check_branch
      %32 = sbr.rel (0) target = $region17
    $region16: #{shapenet_graphclass_head.1} parent=1 // pred_region
      _
    $region17: #{shapenet_graphclass_head.1} parent=1 // pred_fallthru
      _
    // Predicated region
    $region18: #{shapenet_graphclass_head.1} parent=1 // pred_check
      _
    $region19: #{shapenet_graphclass_head.1} parent=1 // pred_check_branch
      %34 = sbr.rel (0) target = $region21
    $region20: #{shapenet_graphclass_head.1} parent=1 // pred_region
      _
    $region21: #{shapenet_graphclass_head.1} parent=1 // pred_fallthru
      _
    // Predicated region
    $region22: #{shapenet_graphclass_head.1} parent=1 // pred_check
      _
    $region23: #{shapenet_graphclass_head.1} parent=1 // pred_check_branch
      %36 = sbr.rel (0) target = $region25
    $region24: #{shapenet_graphclass_head.1} parent=1 // pred_region
      _
    $region25: #{shapenet_graphclass_head.1} parent=1 // pred_fallthru
      _
    // Predicated region
    $region26: #{shapenet_graphclass_head.1} parent=1 // pred_check
      _
    $region27: #{shapenet_graphclass_head.1} parent=1 // pred_check_branch
      %38 = sbr.rel (0) target = $region29
    $region28: #{shapenet_graphclass_head.1} parent=1 // pred_region
      _
    $region29: #{shapenet_graphclass_head.1} parent=1 // pred_fallthru
      _
    // Predicated region
    $region30: #{shapenet_graphclass_head.1} parent=1 // pred_check
      _
    $region31: #{shapenet_graphclass_head.1} parent=1 // pred_check_branch
      %40 = sbr.rel (0) target = $region33
    $region32: #{shapenet_graphclass_head.1} parent=1 // pred_region
      %41 = dma.done [#allocation5], 10240
    $region33: #{shapenet_graphclass_head.1} parent=1 // pred_fallthru
      _
    %v43 = vld [vmem:[%s0] sm:$0xff]
    %v44 = vld [vmem:[%s0 + $0x8] sm:$0xff]
    %v45 = vld [vmem:[%s0 + $0x10] sm:$0xff]
    %v46 = vld [vmem:[%s0 + $0x18] sm:$0xff]
    %v47 = vld [vmem:[%s0 + $0x20] sm:$0xff]
    %v48 = vld [vmem:[%s0 + $0x28] sm:$0xff]
    %v49 = vld [vmem:[%s0 + $0x30] sm:$0xff]
    %v50 = vld [vmem:[%s0 + $0x38] sm:$0xff]
    %v51 = vld [vmem:[%s0 + $0x40] sm:$0xff]
    %v52 = vld [vmem:[%s0 + $0x48] sm:$0xff]
    %v53 = vld [vmem:[#allocation4] sm:$0xf]
    %v54 = vld [vmem:[#allocation4 + $0x4] sm:$0xf]
    %v55 = vld [vmem:[#allocation4 + $0x8] sm:$0xf]
    %v56 = vld [vmem:[#allocation4 + $0xc] sm:$0xf]
    %v57 = vld [vmem:[#allocation4 + $0x10] sm:$0xf]
    %v58 = vld [vmem:[#allocation4 + $0x14] sm:$0xf]
    %v59 = vld [vmem:[#allocation4 + $0x18] sm:$0xf]
    %v60 = vld [vmem:[#allocation4 + $0x1c] sm:$0xf]
    %v61 = vld [vmem:[#allocation4 + $0x20] sm:$0xf]
    %v62 = vld [vmem:[#allocation4 + $0x24] sm:$0xf]
    %v63 = vld [vmem:[#allocation4 + $0x28] sm:$0xf]
    %v64 = vld [vmem:[#allocation4 + $0x2c] sm:$0xf]
    %v65 = vld [vmem:[#allocation4 + $0x30] sm:$0xf]
    %v66 = vld [vmem:[#allocation4 + $0x34] sm:$0xf]
    %v67 = vld [vmem:[#allocation4 + $0x38] sm:$0xf]
    %v68 = vld [vmem:[#allocation4 + $0x3c] sm:$0xf]
    %v69 = vld [vmem:[#allocation4 + $0x40] sm:$0xf]
    %v70 = vld [vmem:[#allocation4 + $0x44] sm:$0xf]
    %v71 = vld [vmem:[#allocation4 + $0x48] sm:$0xf]
    %v72 = vld [vmem:[#allocation4 + $0x4c] sm:$0xf]
    %v73 = vld [vmem:[#allocation4 + $0x50] sm:$0xf]
    %v74 = vld [vmem:[#allocation4 + $0x54] sm:$0xf]
    %v75 = vld [vmem:[#allocation4 + $0x58] sm:$0xf]
    %v76 = vld [vmem:[#allocation4 + $0x5c] sm:$0xf]
    %v77 = vld [vmem:[#allocation4 + $0x60] sm:$0xf]
    %v78 = vld [vmem:[#allocation4 + $0x64] sm:$0xf]
    %v79 = vld [vmem:[#allocation4 + $0x68] sm:$0xf]
    %v80 = vld [vmem:[#allocation4 + $0x6c] sm:$0xf]
    %v81 = vld [vmem:[#allocation4 + $0x70] sm:$0xf]
    %v82 = vld [vmem:[#allocation4 + $0x74] sm:$0xf]
    %v83 = vld [vmem:[#allocation4 + $0x78] sm:$0xf]
    %v84 = vld [vmem:[#allocation4 + $0x7c] sm:$0xf]
    %v85 = vld [vmem:[#allocation4 + $0x80] sm:$0xf]
    %v86 = vld [vmem:[#allocation4 + $0x84] sm:$0xf]
    %v87 = vld [vmem:[#allocation4 + $0x88] sm:$0xf]
    %v88 = vld [vmem:[#allocation4 + $0x8c] sm:$0xf]
    %v89 = vld [vmem:[#allocation4 + $0x90] sm:$0xf]
    %v90 = vld [vmem:[#allocation4 + $0x94] sm:$0xf]
    %v91 = vld [vmem:[#allocation4 + $0x98] sm:$0xf]
    %v92 = vld [vmem:[#allocation4 + $0x9c] sm:$0xf]
    %v93 = vld [vmem:[#allocation4 + $0xa0] sm:$0xf]
    %v94 = vld [vmem:[#allocation4 + $0xa4] sm:$0xf]
    %v95 = vld [vmem:[#allocation4 + $0xa8] sm:$0xf]
    %v96 = vld [vmem:[#allocation4 + $0xac] sm:$0xf]
    %v97 = vld [vmem:[#allocation4 + $0xb0] sm:$0xf]
    %v98 = vld [vmem:[#allocation4 + $0xb4] sm:$0xf]
    %v99 = vld [vmem:[#allocation4 + $0xb8] sm:$0xf]
    %v100 = vld [vmem:[#allocation4 + $0xbc] sm:$0xf]
    %v101 = vld [vmem:[#allocation4 + $0xc0] sm:$0xf]
    %v102 = vld [vmem:[#allocation4 + $0xc4] sm:$0xf]
    %v103 = vld [vmem:[#allocation4 + $0xc8] sm:$0xf]
    %v104 = vld [vmem:[#allocation4 + $0xcc] sm:$0xf]
    %v105 = vld [vmem:[#allocation4 + $0xd0] sm:$0xf]
    %v106 = vld [vmem:[#allocation4 + $0xd4] sm:$0xf]
    %v107 = vld [vmem:[#allocation4 + $0xd8] sm:$0xf]
    %v108 = vld [vmem:[#allocation4 + $0xdc] sm:$0xf]
    %v109 = vld [vmem:[#allocation4 + $0xe0] sm:$0xf]
    %v110 = vld [vmem:[#allocation4 + $0xe4] sm:$0xf]
    %v111 = vld [vmem:[#allocation4 + $0xe8] sm:$0xf]
    %v112 = vld [vmem:[#allocation4 + $0xec] sm:$0xf]
    %v113 = vld [vmem:[#allocation4 + $0xf0] sm:$0xf]
    %v114 = vld [vmem:[#allocation4 + $0xf4] sm:$0xf]
    %v115 = vld [vmem:[#allocation4 + $0xf8] sm:$0xf]
    %v116 = vld [vmem:[#allocation4 + $0xfc] sm:$0xf]
    %v117 = vld [vmem:[#allocation4 + $0x100] sm:$0xf]
    %v118 = vld [vmem:[#allocation4 + $0x104] sm:$0xf]
    %v119 = vld [vmem:[#allocation4 + $0x108] sm:$0xf]
    %v120 = vld [vmem:[#allocation4 + $0x10c] sm:$0xf]
    %v121 = vld [vmem:[#allocation4 + $0x110] sm:$0xf]
    %v122 = vld [vmem:[#allocation4 + $0x114] sm:$0xf]
    %v123 = vld [vmem:[#allocation4 + $0x118] sm:$0xf]
    %v124 = vld [vmem:[#allocation4 + $0x11c] sm:$0xf]
    %v125 = vld [vmem:[#allocation4 + $0x120] sm:$0xf]
    %v126 = vld [vmem:[#allocation4 + $0x124] sm:$0xf]
    %v127 = vld [vmem:[#allocation4 + $0x128] sm:$0xf]
    %v128 = vld [vmem:[#allocation4 + $0x12c] sm:$0xf]
    %v129 = vld [vmem:[#allocation4 + $0x130] sm:$0xf]
    %v130 = vld [vmem:[#allocation4 + $0x134] sm:$0xf]
    %v131 = vld [vmem:[#allocation4 + $0x138] sm:$0xf]
    %v132 = vld [vmem:[#allocation4 + $0x13c] sm:$0xf]
    %v133 = vld [vmem:[#allocation4 + $0x140] sm:$0xf]
    %v134 = vld [vmem:[#allocation4 + $0x144] sm:$0xf]
    %v135 = vld [vmem:[#allocation4 + $0x148] sm:$0xf]
    %v136 = vld [vmem:[#allocation4 + $0x14c] sm:$0xf]
    %v137 = vld [vmem:[#allocation4 + $0x150] sm:$0xf]
    %v138 = vld [vmem:[#allocation4 + $0x154] sm:$0xf]
    %v139 = vld [vmem:[#allocation4 + $0x158] sm:$0xf]
    %v140 = vld [vmem:[#allocation4 + $0x15c] sm:$0xf]
    %v141 = vld [vmem:[#allocation4 + $0x160] sm:$0xf]
    %v142 = vld [vmem:[#allocation4 + $0x164] sm:$0xf]
    %v143 = vld [vmem:[#allocation4 + $0x168] sm:$0xf]
    %v144 = vld [vmem:[#allocation4 + $0x16c] sm:$0xf]
    %v145 = vld [vmem:[#allocation4 + $0x170] sm:$0xf]
    %v146 = vld [vmem:[#allocation4 + $0x174] sm:$0xf]
    %v147 = vld [vmem:[#allocation4 + $0x178] sm:$0xf]
    %v148 = vld [vmem:[#allocation4 + $0x17c] sm:$0xf]
    %v149 = vld [vmem:[#allocation4 + $0x180] sm:$0xf]
    %v150 = vld [vmem:[#allocation4 + $0x184] sm:$0xf]
    %v151 = vld [vmem:[#allocation4 + $0x188] sm:$0xf]
    %v152 = vld [vmem:[#allocation4 + $0x18c] sm:$0xf]
    %v153 = vld [vmem:[#allocation4 + $0x190] sm:$0xf]
    %v154 = vld [vmem:[#allocation4 + $0x194] sm:$0xf]
    %v155 = vld [vmem:[#allocation4 + $0x198] sm:$0xf]
    %v156 = vld [vmem:[#allocation4 + $0x19c] sm:$0xf]
    %v157 = vld [vmem:[#allocation4 + $0x1a0] sm:$0xf]
    %v158 = vld [vmem:[#allocation4 + $0x1a4] sm:$0xf]
    %v159 = vld [vmem:[#allocation4 + $0x1a8] sm:$0xf]
    %v160 = vld [vmem:[#allocation4 + $0x1ac] sm:$0xf]
    %v161 = vld [vmem:[#allocation4 + $0x1b0] sm:$0xf]
    %v162 = vld [vmem:[#allocation4 + $0x1b4] sm:$0xf]
    %v163 = vld [vmem:[#allocation4 + $0x1b8] sm:$0xf]
    %v164 = vld [vmem:[#allocation4 + $0x1bc] sm:$0xf]
    %v165 = vld [vmem:[#allocation4 + $0x1c0] sm:$0xf]
    %v166 = vld [vmem:[#allocation4 + $0x1c4] sm:$0xf]
    %v167 = vld [vmem:[#allocation4 + $0x1c8] sm:$0xf]
    %v168 = vld [vmem:[#allocation4 + $0x1cc] sm:$0xf]
    %v169 = vld [vmem:[#allocation4 + $0x1d0] sm:$0xf]
    %v170 = vld [vmem:[#allocation4 + $0x1d4] sm:$0xf]
    %v171 = vld [vmem:[#allocation4 + $0x1d8] sm:$0xf]
    %v172 = vld [vmem:[#allocation4 + $0x1dc] sm:$0xf]
    %v173 = vld [vmem:[#allocation4 + $0x1e0] sm:$0xf]
    %v174 = vld [vmem:[#allocation4 + $0x1e4] sm:$0xf]
    %v175 = vld [vmem:[#allocation4 + $0x1e8] sm:$0xf]
    %v176 = vld [vmem:[#allocation4 + $0x1ec] sm:$0xf]
    %v177 = vld [vmem:[#allocation4 + $0x1f0] sm:$0xf]
    %v178 = vld [vmem:[#allocation4 + $0x1f4] sm:$0xf]
    %v179 = vld [vmem:[#allocation4 + $0x1f8] sm:$0xf]
    %v180 = vld [vmem:[#allocation4 + $0x1fc] sm:$0xf]
    %v181 = vld [vmem:[#allocation4 + $0x200] sm:$0xf]
    %v182 = vld [vmem:[#allocation4 + $0x204] sm:$0xf]
    %v183 = vld [vmem:[#allocation4 + $0x208] sm:$0xf]
    %v184 = vld [vmem:[#allocation4 + $0x20c] sm:$0xf]
    %v185 = vld [vmem:[#allocation4 + $0x210] sm:$0xf]
    %v186 = vld [vmem:[#allocation4 + $0x214] sm:$0xf]
    %v187 = vld [vmem:[#allocation4 + $0x218] sm:$0xf]
    %v188 = vld [vmem:[#allocation4 + $0x21c] sm:$0xf]
    %v189 = vld [vmem:[#allocation4 + $0x220] sm:$0xf]
    %v190 = vld [vmem:[#allocation4 + $0x224] sm:$0xf]
    %v191 = vld [vmem:[#allocation4 + $0x228] sm:$0xf]
    %v192 = vld [vmem:[#allocation4 + $0x22c] sm:$0xf]
    %v193 = vld [vmem:[#allocation4 + $0x230] sm:$0xf]
    %v194 = vld [vmem:[#allocation4 + $0x234] sm:$0xf]
    %v195 = vld [vmem:[#allocation4 + $0x238] sm:$0xf]
    %v196 = vld [vmem:[#allocation4 + $0x23c] sm:$0xf]
    %v197 = vld [vmem:[#allocation4 + $0x240] sm:$0xf]
    %v198 = vld [vmem:[#allocation4 + $0x244] sm:$0xf]
    %v199 = vld [vmem:[#allocation4 + $0x248] sm:$0xf]
    %v200 = vld [vmem:[#allocation4 + $0x24c] sm:$0xf]
    %v201 = vld [vmem:[#allocation4 + $0x250] sm:$0xf]
    %v202 = vld [vmem:[#allocation4 + $0x254] sm:$0xf]
    %v203 = vld [vmem:[#allocation4 + $0x258] sm:$0xf]
    %v204 = vld [vmem:[#allocation4 + $0x25c] sm:$0xf]
    %v205 = vld [vmem:[#allocation4 + $0x260] sm:$0xf]
    %v206 = vld [vmem:[#allocation4 + $0x264] sm:$0xf]
    %v207 = vld [vmem:[#allocation4 + $0x268] sm:$0xf]
    %v208 = vld [vmem:[#allocation4 + $0x26c] sm:$0xf]
    %v209 = vld [vmem:[#allocation4 + $0x270] sm:$0xf]
    %v210 = vld [vmem:[#allocation4 + $0x274] sm:$0xf]
    %v211 = vld [vmem:[#allocation4 + $0x278] sm:$0xf]
    %v212 = vld [vmem:[#allocation4 + $0x27c] sm:$0xf]
    %v213 = vld [vmem:[%s2] sm:$0x1]
    %v215 = vlaneseq
    %v216 = vshrl.u32 %v215, 7
    %v217 = vsub.s32 0, %v216
    %v218 = vrot.slane %v213, %v217
    %v230 = vunpack.c.l.b16 %v43
    %v231 = vunpack.c.h.b16 %v43
    %v232 = vunpack.c.l.b16 %v44
    %v233 = vunpack.c.h.b16 %v44
    %v234 = vunpack.c.l.b16 %v45
    %v235 = vunpack.c.h.b16 %v45
    %v236 = vunpack.c.l.b16 %v46
    %v237 = vunpack.c.h.b16 %v46
    %v238 = vunpack.c.l.b16 %v47
    %v239 = vunpack.c.h.b16 %v47
    %v240 = vunpack.c.l.b16 %v48
    %v241 = vunpack.c.h.b16 %v48
    %v242 = vunpack.c.l.b16 %v49
    %v243 = vunpack.c.h.b16 %v49
    %v244 = vunpack.c.l.b16 %v50
    %v245 = vunpack.c.h.b16 %v50
    %v246 = vunpack.c.l.b16 %v51
    %v247 = vunpack.c.h.b16 %v51
    %v248 = vunpack.c.l.b16 %v52
    %v249 = vunpack.c.h.b16 %v52
    %v250 = vpack.c.b16 %v240, %v230
    %v251 = vpack.c.b16 %v241, %v231
    %v252 = vpack.c.b16 %v242, %v232
    %v253 = vpack.c.b16 %v243, %v233
    %v254 = vpack.c.b16 %v244, %v234
    %v255 = vpack.c.b16 %v245, %v235
    %v256 = vpack.c.b16 %v246, %v236
    %v257 = vpack.c.b16 %v247, %v237
    %v258 = vpack.c.b16 %v248, %v238
    %v259 = vpack.c.b16 %v249, %v239
    %v430 = vunpack.c.l.b16 %v53
    %v431 = vunpack.c.l.b16 %v54
    %v432 = vunpack.c.l.b16 %v55
    %v433 = vunpack.c.l.b16 %v56
    %v434 = vunpack.c.l.b16 %v57
    %v435 = vunpack.c.l.b16 %v58
    %v436 = vunpack.c.l.b16 %v59
    %v437 = vunpack.c.l.b16 %v60
    %v438 = vunpack.c.l.b16 %v61
    %v439 = vunpack.c.l.b16 %v62
    %v440 = vunpack.c.l.b16 %v63
    %v441 = vunpack.c.l.b16 %v64
    %v442 = vunpack.c.l.b16 %v65
    %v443 = vunpack.c.l.b16 %v66
    %v444 = vunpack.c.l.b16 %v67
    %v445 = vunpack.c.l.b16 %v68
    %v446 = vunpack.c.l.b16 %v69
    %v447 = vunpack.c.l.b16 %v70
    %v448 = vunpack.c.l.b16 %v71
    %v449 = vunpack.c.l.b16 %v72
    %v450 = vunpack.c.l.b16 %v73
    %v451 = vunpack.c.l.b16 %v74
    %v452 = vunpack.c.l.b16 %v75
    %v453 = vunpack.c.l.b16 %v76
    %v454 = vunpack.c.l.b16 %v77
    %v455 = vunpack.c.l.b16 %v78
    %v456 = vunpack.c.l.b16 %v79
    %v457 = vunpack.c.l.b16 %v80
    %v458 = vunpack.c.l.b16 %v81
    %v459 = vunpack.c.l.b16 %v82
    %v460 = vunpack.c.l.b16 %v83
    %v461 = vunpack.c.l.b16 %v84
    %v462 = vunpack.c.l.b16 %v85
    %v463 = vunpack.c.l.b16 %v86
    %v464 = vunpack.c.l.b16 %v87
    %v465 = vunpack.c.l.b16 %v88
    %v466 = vunpack.c.l.b16 %v89
    %v467 = vunpack.c.l.b16 %v90
    %v468 = vunpack.c.l.b16 %v91
    %v469 = vunpack.c.l.b16 %v92
    %v470 = vunpack.c.l.b16 %v93
    %v471 = vunpack.c.l.b16 %v94
    %v472 = vunpack.c.l.b16 %v95
    %v473 = vunpack.c.l.b16 %v96
    %v474 = vunpack.c.l.b16 %v97
    %v475 = vunpack.c.l.b16 %v98
    %v476 = vunpack.c.l.b16 %v99
    %v477 = vunpack.c.l.b16 %v100
    %v478 = vunpack.c.l.b16 %v101
    %v479 = vunpack.c.l.b16 %v102
    %v480 = vunpack.c.l.b16 %v103
    %v481 = vunpack.c.l.b16 %v104
    %v482 = vunpack.c.l.b16 %v105
    %v483 = vunpack.c.l.b16 %v106
    %v484 = vunpack.c.l.b16 %v107
    %v485 = vunpack.c.l.b16 %v108
    %v486 = vunpack.c.l.b16 %v109
    %v487 = vunpack.c.l.b16 %v110
    %v488 = vunpack.c.l.b16 %v111
    %v489 = vunpack.c.l.b16 %v112
    %v490 = vunpack.c.l.b16 %v113
    %v491 = vunpack.c.l.b16 %v114
    %v492 = vunpack.c.l.b16 %v115
    %v493 = vunpack.c.l.b16 %v116
    %v494 = vunpack.c.l.b16 %v117
    %v495 = vunpack.c.l.b16 %v118
    %v496 = vunpack.c.l.b16 %v119
    %v497 = vunpack.c.l.b16 %v120
    %v498 = vunpack.c.l.b16 %v121
    %v499 = vunpack.c.l.b16 %v122
    %v500 = vunpack.c.l.b16 %v123
    %v501 = vunpack.c.l.b16 %v124
    %v502 = vunpack.c.l.b16 %v125
    %v503 = vunpack.c.l.b16 %v126
    %v504 = vunpack.c.l.b16 %v127
    %v505 = vunpack.c.l.b16 %v128
    %v506 = vunpack.c.l.b16 %v129
    %v507 = vunpack.c.l.b16 %v130
    %v508 = vunpack.c.l.b16 %v131
    %v509 = vunpack.c.l.b16 %v132
    %v510 = vunpack.c.l.b16 %v133
    %v511 = vunpack.c.l.b16 %v134
    %v512 = vunpack.c.l.b16 %v135
    %v513 = vunpack.c.l.b16 %v136
    %v514 = vunpack.c.l.b16 %v137
    %v515 = vunpack.c.l.b16 %v138
    %v516 = vunpack.c.l.b16 %v139
    %v517 = vunpack.c.l.b16 %v140
    %v518 = vunpack.c.l.b16 %v141
    %v519 = vunpack.c.l.b16 %v142
    %v520 = vunpack.c.l.b16 %v143
    %v521 = vunpack.c.l.b16 %v144
    %v522 = vunpack.c.l.b16 %v145
    %v523 = vunpack.c.l.b16 %v146
    %v524 = vunpack.c.l.b16 %v147
    %v525 = vunpack.c.l.b16 %v148
    %v526 = vunpack.c.l.b16 %v149
    %v527 = vunpack.c.l.b16 %v150
    %v528 = vunpack.c.l.b16 %v151
    %v529 = vunpack.c.l.b16 %v152
    %v530 = vunpack.c.l.b16 %v153
    %v531 = vunpack.c.l.b16 %v154
    %v532 = vunpack.c.l.b16 %v155
    %v533 = vunpack.c.l.b16 %v156
    %v534 = vunpack.c.l.b16 %v157
    %v535 = vunpack.c.l.b16 %v158
    %v536 = vunpack.c.l.b16 %v159
    %v537 = vunpack.c.l.b16 %v160
    %v538 = vunpack.c.l.b16 %v161
    %v539 = vunpack.c.l.b16 %v162
    %v540 = vunpack.c.l.b16 %v163
    %v541 = vunpack.c.l.b16 %v164
    %v542 = vunpack.c.l.b16 %v165
    %v543 = vunpack.c.l.b16 %v166
    %v544 = vunpack.c.l.b16 %v167
    %v545 = vunpack.c.l.b16 %v168
    %v546 = vunpack.c.l.b16 %v169
    %v547 = vunpack.c.l.b16 %v170
    %v548 = vunpack.c.l.b16 %v171
    %v549 = vunpack.c.l.b16 %v172
    %v550 = vunpack.c.l.b16 %v173
    %v551 = vunpack.c.l.b16 %v174
    %v552 = vunpack.c.l.b16 %v175
    %v553 = vunpack.c.l.b16 %v176
    %v554 = vunpack.c.l.b16 %v177
    %v555 = vunpack.c.l.b16 %v178
    %v556 = vunpack.c.l.b16 %v179
    %v557 = vunpack.c.l.b16 %v180
    %v558 = vunpack.c.l.b16 %v181
    %v559 = vunpack.c.l.b16 %v182
    %v560 = vunpack.c.l.b16 %v183
    %v561 = vunpack.c.l.b16 %v184
    %v562 = vunpack.c.l.b16 %v185
    %v563 = vunpack.c.l.b16 %v186
    %v564 = vunpack.c.l.b16 %v187
    %v565 = vunpack.c.l.b16 %v188
    %v566 = vunpack.c.l.b16 %v189
    %v567 = vunpack.c.l.b16 %v190
    %v568 = vunpack.c.l.b16 %v191
    %v569 = vunpack.c.l.b16 %v192
    %v570 = vunpack.c.l.b16 %v193
    %v571 = vunpack.c.l.b16 %v194
    %v572 = vunpack.c.l.b16 %v195
    %v573 = vunpack.c.l.b16 %v196
    %v574 = vunpack.c.l.b16 %v197
    %v575 = vunpack.c.l.b16 %v198
    %v576 = vunpack.c.l.b16 %v199
    %v577 = vunpack.c.l.b16 %v200
    %v578 = vunpack.c.l.b16 %v201
    %v579 = vunpack.c.l.b16 %v202
    %v580 = vunpack.c.l.b16 %v203
    %v581 = vunpack.c.l.b16 %v204
    %v582 = vunpack.c.l.b16 %v205
    %v583 = vunpack.c.l.b16 %v206
    %v584 = vunpack.c.l.b16 %v207
    %v585 = vunpack.c.l.b16 %v208
    %v586 = vunpack.c.l.b16 %v209
    %v587 = vunpack.c.l.b16 %v210
    %v588 = vunpack.c.l.b16 %v211
    %v589 = vunpack.c.l.b16 %v212
    %v590 = vpack.c.b16 %v431, %v430
    %v591 = vpack.c.b16 %v433, %v432
    %v592 = vpack.c.b16 %v435, %v434
    %v593 = vpack.c.b16 %v437, %v436
    %v594 = vpack.c.b16 %v439, %v438
    %v595 = vpack.c.b16 %v441, %v440
    %v596 = vpack.c.b16 %v443, %v442
    %v597 = vpack.c.b16 %v445, %v444
    %v598 = vpack.c.b16 %v447, %v446
    %v599 = vpack.c.b16 %v449, %v448
    %v600 = vpack.c.b16 %v451, %v450
    %v601 = vpack.c.b16 %v453, %v452
    %v602 = vpack.c.b16 %v455, %v454
    %v603 = vpack.c.b16 %v457, %v456
    %v604 = vpack.c.b16 %v459, %v458
    %v605 = vpack.c.b16 %v461, %v460
    %v606 = vpack.c.b16 %v463, %v462
    %v607 = vpack.c.b16 %v465, %v464
    %v608 = vpack.c.b16 %v467, %v466
    %v609 = vpack.c.b16 %v469, %v468
    %v610 = vpack.c.b16 %v471, %v470
    %v611 = vpack.c.b16 %v473, %v472
    %v612 = vpack.c.b16 %v475, %v474
    %v613 = vpack.c.b16 %v477, %v476
    %v614 = vpack.c.b16 %v479, %v478
    %v615 = vpack.c.b16 %v481, %v480
    %v616 = vpack.c.b16 %v483, %v482
    %v617 = vpack.c.b16 %v485, %v484
    %v618 = vpack.c.b16 %v487, %v486
    %v619 = vpack.c.b16 %v489, %v488
    %v620 = vpack.c.b16 %v491, %v490
    %v621 = vpack.c.b16 %v493, %v492
    %v622 = vpack.c.b16 %v495, %v494
    %v623 = vpack.c.b16 %v497, %v496
    %v624 = vpack.c.b16 %v499, %v498
    %v625 = vpack.c.b16 %v501, %v500
    %v626 = vpack.c.b16 %v503, %v502
    %v627 = vpack.c.b16 %v505, %v504
    %v628 = vpack.c.b16 %v507, %v506
    %v629 = vpack.c.b16 %v509, %v508
    %v630 = vpack.c.b16 %v511, %v510
    %v631 = vpack.c.b16 %v513, %v512
    %v632 = vpack.c.b16 %v515, %v514
    %v633 = vpack.c.b16 %v517, %v516
    %v634 = vpack.c.b16 %v519, %v518
    %v635 = vpack.c.b16 %v521, %v520
    %v636 = vpack.c.b16 %v523, %v522
    %v637 = vpack.c.b16 %v525, %v524
    %v638 = vpack.c.b16 %v527, %v526
    %v639 = vpack.c.b16 %v529, %v528
    %v640 = vpack.c.b16 %v531, %v530
    %v641 = vpack.c.b16 %v533, %v532
    %v642 = vpack.c.b16 %v535, %v534
    %v643 = vpack.c.b16 %v537, %v536
    %v644 = vpack.c.b16 %v539, %v538
    %v645 = vpack.c.b16 %v541, %v540
    %v646 = vpack.c.b16 %v543, %v542
    %v647 = vpack.c.b16 %v545, %v544
    %v648 = vpack.c.b16 %v547, %v546
    %v649 = vpack.c.b16 %v549, %v548
    %v650 = vpack.c.b16 %v551, %v550
    %v651 = vpack.c.b16 %v553, %v552
    %v652 = vpack.c.b16 %v555, %v554
    %v653 = vpack.c.b16 %v557, %v556
    %v654 = vpack.c.b16 %v559, %v558
    %v655 = vpack.c.b16 %v561, %v560
    %v656 = vpack.c.b16 %v563, %v562
    %v657 = vpack.c.b16 %v565, %v564
    %v658 = vpack.c.b16 %v567, %v566
    %v659 = vpack.c.b16 %v569, %v568
    %v660 = vpack.c.b16 %v571, %v570
    %v661 = vpack.c.b16 %v573, %v572
    %v662 = vpack.c.b16 %v575, %v574
    %v663 = vpack.c.b16 %v577, %v576
    %v664 = vpack.c.b16 %v579, %v578
    %v665 = vpack.c.b16 %v581, %v580
    %v666 = vpack.c.b16 %v583, %v582
    %v667 = vpack.c.b16 %v585, %v584
    %v668 = vpack.c.b16 %v587, %v586
    %v669 = vpack.c.b16 %v589, %v588
    %750 = vmatprep.subr.bf16.mxu0 0
    %751 = vmatpush1.bf16.msra.mxu0 %v590
    %752 = vmatprep.subr.bf16.mxu0 0
    %753 = vmatpush1.bf16.msra.mxu0 %v591
    %754 = vmatprep.subr.bf16.mxu0 0
    %755 = vmatpush1.bf16.msra.mxu0 %v592
    %756 = vmatprep.subr.bf16.mxu0 0
    %757 = vmatpush1.bf16.msra.mxu0 %v593
    %758 = vmatprep.subr.bf16.mxu0 0
    %759 = vmatpush1.bf16.msra.mxu0 %v594
    %760 = vmatprep.subr.bf16.mxu0 0
    %761 = vmatpush1.bf16.msra.mxu0 %v595
    %762 = vmatprep.subr.bf16.mxu0 0
    %763 = vmatpush1.bf16.msra.mxu0 %v596
    %764 = vmatprep.subr.bf16.mxu0 0
    %765 = vmatpush1.bf16.msra.mxu0 %v597
    %766 = vmatprep.subr.bf16.mxu0 0
    %767 = vmatpush1.bf16.msra.mxu0 %v598
    %768 = vmatprep.subr.bf16.mxu0 0
    %769 = vmatpush1.bf16.msra.mxu0 %v599
    %770 = vmatprep.subr.bf16.mxu0 0
    %771 = vmatpush1.bf16.msra.mxu0 %v600
    %772 = vmatprep.subr.bf16.mxu0 0
    %773 = vmatpush1.bf16.msra.mxu0 %v601
    %774 = vmatprep.subr.bf16.mxu0 0
    %775 = vmatpush1.bf16.msra.mxu0 %v602
    %776 = vmatprep.subr.bf16.mxu0 0
    %777 = vmatpush1.bf16.msra.mxu0 %v603
    %778 = vmatprep.subr.bf16.mxu0 0
    %779 = vmatpush1.bf16.msra.mxu0 %v604
    %780 = vmatprep.subr.bf16.mxu0 0
    %781 = vmatpush1.bf16.msra.mxu0 %v605
    %782 = vmatprep.mubr.bf16.mxu0 %v251
    %783 = vmatmul.mubr.bf16.gmra.mrb[0].mxu0 %v250
    %v784 = vpop.f32.mrb[0].mxu0
    %v785 = vadd.f32 %v218, %v784
    %v786 = vpop.f32.mrb[0].mxu0
    %v787 = vpop.f32.mrb[0].mxu0
    %v788 = vadd.f32 %v218, %v787
    %v789 = vpop.f32.mrb[0].mxu0
    %790 = vdwg.mxu0
    %791 = vmatprep.subr.bf16.mxu0 0
    %792 = vmatpush1.bf16.msra.mxu0 %v606
    %793 = vmatprep.subr.bf16.mxu0 0
    %794 = vmatpush1.bf16.msra.mxu0 %v607
    %795 = vmatprep.subr.bf16.mxu0 0
    %796 = vmatpush1.bf16.msra.mxu0 %v608
    %797 = vmatprep.subr.bf16.mxu0 0
    %798 = vmatpush1.bf16.msra.mxu0 %v609
    %799 = vmatprep.subr.bf16.mxu0 0
    %800 = vmatpush1.bf16.msra.mxu0 %v610
    %801 = vmatprep.subr.bf16.mxu0 0
    %802 = vmatpush1.bf16.msra.mxu0 %v611
    %803 = vmatprep.subr.bf16.mxu0 0
    %804 = vmatpush1.bf16.msra.mxu0 %v612
    %805 = vmatprep.subr.bf16.mxu0 0
    %806 = vmatpush1.bf16.msra.mxu0 %v613
    %807 = vmatprep.subr.bf16.mxu0 0
    %808 = vmatpush1.bf16.msra.mxu0 %v614
    %809 = vmatprep.subr.bf16.mxu0 0
    %810 = vmatpush1.bf16.msra.mxu0 %v615
    %811 = vmatprep.subr.bf16.mxu0 0
    %812 = vmatpush1.bf16.msra.mxu0 %v616
    %813 = vmatprep.subr.bf16.mxu0 0
    %814 = vmatpush1.bf16.msra.mxu0 %v617
    %815 = vmatprep.subr.bf16.mxu0 0
    %816 = vmatpush1.bf16.msra.mxu0 %v618
    %817 = vmatprep.subr.bf16.mxu0 0
    %818 = vmatpush1.bf16.msra.mxu0 %v619
    %819 = vmatprep.subr.bf16.mxu0 0
    %820 = vmatpush1.bf16.msra.mxu0 %v620
    %821 = vmatprep.subr.bf16.mxu0 0
    %822 = vmatpush1.bf16.msra.mxu0 %v621
    %823 = vmatprep.mubr.bf16.mxu0 %v253
    %824 = vmatmul.mubr.bf16.gmra.mrb[0].mxu0 %v252
    %v825 = vpop.f32.mrb[0].mxu0
    %v826 = vadd.f32 %v785, %v825
    %v827 = vpop.f32.mrb[0].mxu0
    %v828 = vpop.f32.mrb[0].mxu0
    %v829 = vadd.f32 %v788, %v828
    %v830 = vpop.f32.mrb[0].mxu0
    %831 = vdwg.mxu0
    %832 = vmatprep.subr.bf16.mxu0 0
    %833 = vmatpush1.bf16.msra.mxu0 %v622
    %834 = vmatprep.subr.bf16.mxu0 0
    %835 = vmatpush1.bf16.msra.mxu0 %v623
    %836 = vmatprep.subr.bf16.mxu0 0
    %837 = vmatpush1.bf16.msra.mxu0 %v624
    %838 = vmatprep.subr.bf16.mxu0 0
    %839 = vmatpush1.bf16.msra.mxu0 %v625
    %840 = vmatprep.subr.bf16.mxu0 0
    %841 = vmatpush1.bf16.msra.mxu0 %v626
    %842 = vmatprep.subr.bf16.mxu0 0
    %843 = vmatpush1.bf16.msra.mxu0 %v627
    %844 = vmatprep.subr.bf16.mxu0 0
    %845 = vmatpush1.bf16.msra.mxu0 %v628
    %846 = vmatprep.subr.bf16.mxu0 0
    %847 = vmatpush1.bf16.msra.mxu0 %v629
    %848 = vmatprep.subr.bf16.mxu0 0
    %849 = vmatpush1.bf16.msra.mxu0 %v630
    %850 = vmatprep.subr.bf16.mxu0 0
    %851 = vmatpush1.bf16.msra.mxu0 %v631
    %852 = vmatprep.subr.bf16.mxu0 0
    %853 = vmatpush1.bf16.msra.mxu0 %v632
    %854 = vmatprep.subr.bf16.mxu0 0
    %855 = vmatpush1.bf16.msra.mxu0 %v633
    %856 = vmatprep.subr.bf16.mxu0 0
    %857 = vmatpush1.bf16.msra.mxu0 %v634
    %858 = vmatprep.subr.bf16.mxu0 0
    %859 = vmatpush1.bf16.msra.mxu0 %v635
    %860 = vmatprep.subr.bf16.mxu0 0
    %861 = vmatpush1.bf16.msra.mxu0 %v636
    %862 = vmatprep.subr.bf16.mxu0 0
    %863 = vmatpush1.bf16.msra.mxu0 %v637
    %864 = vmatprep.mubr.bf16.mxu0 %v255
    %865 = vmatmul.mubr.bf16.gmra.mrb[0].mxu0 %v254
    %v866 = vpop.f32.mrb[0].mxu0
    %v867 = vadd.f32 %v826, %v866
    %v868 = vpop.f32.mrb[0].mxu0
    %v869 = vpop.f32.mrb[0].mxu0
    %v870 = vadd.f32 %v829, %v869
    %v871 = vpop.f32.mrb[0].mxu0
    %872 = vdwg.mxu0
    %873 = vmatprep.subr.bf16.mxu0 0
    %874 = vmatpush1.bf16.msra.mxu0 %v638
    %875 = vmatprep.subr.bf16.mxu0 0
    %876 = vmatpush1.bf16.msra.mxu0 %v639
    %877 = vmatprep.subr.bf16.mxu0 0
    %878 = vmatpush1.bf16.msra.mxu0 %v640
    %879 = vmatprep.subr.bf16.mxu0 0
    %880 = vmatpush1.bf16.msra.mxu0 %v641
    %881 = vmatprep.subr.bf16.mxu0 0
    %882 = vmatpush1.bf16.msra.mxu0 %v642
    %883 = vmatprep.subr.bf16.mxu0 0
    %884 = vmatpush1.bf16.msra.mxu0 %v643
    %885 = vmatprep.subr.bf16.mxu0 0
    %886 = vmatpush1.bf16.msra.mxu0 %v644
    %887 = vmatprep.subr.bf16.mxu0 0
    %888 = vmatpush1.bf16.msra.mxu0 %v645
    %889 = vmatprep.subr.bf16.mxu0 0
    %890 = vmatpush1.bf16.msra.mxu0 %v646
    %891 = vmatprep.subr.bf16.mxu0 0
    %892 = vmatpush1.bf16.msra.mxu0 %v647
    %893 = vmatprep.subr.bf16.mxu0 0
    %894 = vmatpush1.bf16.msra.mxu0 %v648
    %895 = vmatprep.subr.bf16.mxu0 0
    %896 = vmatpush1.bf16.msra.mxu0 %v649
    %897 = vmatprep.subr.bf16.mxu0 0
    %898 = vmatpush1.bf16.msra.mxu0 %v650
    %899 = vmatprep.subr.bf16.mxu0 0
    %900 = vmatpush1.bf16.msra.mxu0 %v651
    %901 = vmatprep.subr.bf16.mxu0 0
    %902 = vmatpush1.bf16.msra.mxu0 %v652
    %903 = vmatprep.subr.bf16.mxu0 0
    %904 = vmatpush1.bf16.msra.mxu0 %v653
    %905 = vmatprep.mubr.bf16.mxu0 %v257
    %906 = vmatmul.mubr.bf16.gmra.mrb[0].mxu0 %v256
    %v907 = vpop.f32.mrb[0].mxu0
    %v908 = vadd.f32 %v867, %v907
    %v909 = vpop.f32.mrb[0].mxu0
    %v910 = vpop.f32.mrb[0].mxu0
    %v911 = vadd.f32 %v870, %v910
    %v912 = vpop.f32.mrb[0].mxu0
    %913 = vdwg.mxu0
    %914 = vmatprep.subr.bf16.mxu0 0
    %915 = vmatpush1.bf16.msra.mxu0 %v654
    %916 = vmatprep.subr.bf16.mxu0 0
    %917 = vmatpush1.bf16.msra.mxu0 %v655
    %918 = vmatprep.subr.bf16.mxu0 0
    %919 = vmatpush1.bf16.msra.mxu0 %v656
    %920 = vmatprep.subr.bf16.mxu0 0
    %921 = vmatpush1.bf16.msra.mxu0 %v657
    %922 = vmatprep.subr.bf16.mxu0 0
    %923 = vmatpush1.bf16.msra.mxu0 %v658
    %924 = vmatprep.subr.bf16.mxu0 0
    %925 = vmatpush1.bf16.msra.mxu0 %v659
    %926 = vmatprep.subr.bf16.mxu0 0
    %927 = vmatpush1.bf16.msra.mxu0 %v660
    %928 = vmatprep.subr.bf16.mxu0 0
    %929 = vmatpush1.bf16.msra.mxu0 %v661
    %930 = vmatprep.subr.bf16.mxu0 0
    %931 = vmatpush1.bf16.msra.mxu0 %v662
    %932 = vmatprep.subr.bf16.mxu0 0
    %933 = vmatpush1.bf16.msra.mxu0 %v663
    %934 = vmatprep.subr.bf16.mxu0 0
    %935 = vmatpush1.bf16.msra.mxu0 %v664
    %936 = vmatprep.subr.bf16.mxu0 0
    %937 = vmatpush1.bf16.msra.mxu0 %v665
    %938 = vmatprep.subr.bf16.mxu0 0
    %939 = vmatpush1.bf16.msra.mxu0 %v666
    %940 = vmatprep.subr.bf16.mxu0 0
    %941 = vmatpush1.bf16.msra.mxu0 %v667
    %942 = vmatprep.subr.bf16.mxu0 0
    %943 = vmatpush1.bf16.msra.mxu0 %v668
    %944 = vmatprep.subr.bf16.mxu0 0
    %945 = vmatpush1.bf16.msra.mxu0 %v669
    %946 = vmatprep.mubr.bf16.mxu0 %v259
    %947 = vmatmul.mubr.bf16.gmra.mrb[0].mxu0 %v258
    %v948 = vpop.f32.mrb[0].mxu0
    %v949 = vadd.f32 %v908, %v948
    %v950 = vpop.f32.mrb[0].mxu0
    %v951 = vpop.f32.mrb[0].mxu0
    %v952 = vadd.f32 %v911, %v951
    %v953 = vpop.f32.mrb[0].mxu0
    %954 = vdwg.mxu0
    %v955 = vtanh.pop %v949
    %v956 = vtanh.pop %v952
    %v957 = vld [vmem:[%s3] sm:$0x1]
    %v959 = vlaneseq
    %v960 = vshrl.u32 %v959, 7
    %v961 = vsub.s32 0, %v960
    %v962 = vrot.slane %v957, %v961
    %v964 = vmul.f32 %v955, %v962
    %v965 = vmul.f32 %v956, %v962
    %966 = vadd.xlane.f32.xlu0 %v964
    %v967 = vpop.xlane.xlu0 %966
    %968 = vadd.xlane.f32.xlu0 %v965
    %v969 = vpop.xlane.xlu0 %968
    %s970 = sld [smem:[#allocation2]]
    %v971 = vstv %s970
    %v972 = vadd.f32 %v967, %v971
    %v973 = vadd.f32 %v969, %v971
    %v974 = vxor.u32 %v972, 2147483648
    %v975 = vxor.u32 %v973, 2147483648
    %v976 = vmul.f32 %v974, 1.442695
    %v977 = vpow.pop %v976
    %v978 = vmul.f32 %v975, 1.442695
    %v979 = vpow.pop %v978
    %v980 = vadd.f32 %v977, 1.0
    %v981 = vadd.f32 %v979, 1.0
    %v982 = vrcp.pop %v980
    %v983 = vmul.f32 1.0, %v982
    %v984 = vrcp.pop %v981
    %v985 = vmul.f32 1.0, %v984
    %v986 = vunpack.c.l.bf16 %v43
    %v987 = vunpack.c.h.bf16 %v43
    %v988 = vunpack.c.l.bf16 %v44
    %v989 = vunpack.c.h.bf16 %v44
    %v990 = vunpack.c.l.bf16 %v45
    %v991 = vunpack.c.h.bf16 %v45
    %v992 = vunpack.c.l.bf16 %v46
    %v993 = vunpack.c.h.bf16 %v46
    %v994 = vunpack.c.l.bf16 %v47
    %v995 = vunpack.c.h.bf16 %v47
    %v996 = vunpack.c.l.bf16 %v48
    %v997 = vunpack.c.h.bf16 %v48
    %v998 = vunpack.c.l.bf16 %v49
    %v999 = vunpack.c.h.bf16 %v49
    %v1000 = vunpack.c.l.bf16 %v50
    %v1001 = vunpack.c.h.bf16 %v50
    %v1002 = vunpack.c.l.bf16 %v51
    %v1003 = vunpack.c.h.bf16 %v51
    %v1004 = vunpack.c.l.bf16 %v52
    %v1005 = vunpack.c.h.bf16 %v52
    %v1006 = vld [vmem:[%s4] sm:$0xff]
    %v1007 = vld [vmem:[%s4 + $0x8] sm:$0x3]
    %v1010 = vlaneseq
    %v1011 = vshrl.u32 %v1010, 7
    %v1012 = vsub.s32 0, %v1011
    %v1013 = vrot.slane %v1006, %v1012
    %v1014 = vlaneseq
    %v1015 = vshrl.u32 %v1014, 7
    %v1016 = vsub.s32 1, %v1015
    %v1017 = vrot.slane %v1006, %v1016
    %v1018 = vlaneseq
    %v1019 = vshrl.u32 %v1018, 7
    %v1020 = vsub.s32 2, %v1019
    %v1021 = vrot.slane %v1006, %v1020
    %v1022 = vlaneseq
    %v1023 = vshrl.u32 %v1022, 7
    %v1024 = vsub.s32 3, %v1023
    %v1025 = vrot.slane %v1006, %v1024
    %v1026 = vlaneseq
    %v1027 = vshrl.u32 %v1026, 7
    %v1028 = vsub.s32 4, %v1027
    %v1029 = vrot.slane %v1006, %v1028
    %v1030 = vlaneseq
    %v1031 = vshrl.u32 %v1030, 7
    %v1032 = vsub.s32 5, %v1031
    %v1033 = vrot.slane %v1006, %v1032
    %v1034 = vlaneseq
    %v1035 = vshrl.u32 %v1034, 7
    %v1036 = vsub.s32 6, %v1035
    %v1037 = vrot.slane %v1006, %v1036
    %v1038 = vlaneseq
    %v1039 = vshrl.u32 %v1038, 7
    %v1040 = vsub.s32 7, %v1039
    %v1041 = vrot.slane %v1006, %v1040
    %v1042 = vlaneseq
    %v1043 = vshrl.u32 %v1042, 7
    %v1044 = vsub.s32 0, %v1043
    %v1045 = vrot.slane %v1007, %v1044
    %v1046 = vlaneseq
    %v1047 = vshrl.u32 %v1046, 7
    %v1048 = vsub.s32 1, %v1047
    %v1049 = vrot.slane %v1007, %v1048
    %v1060 = vmul.f32 %v986, %v1013
    %v1061 = vmul.f32 %v987, %v1017
    %v1062 = vmul.f32 %v988, %v1021
    %v1063 = vmul.f32 %v989, %v1025
    %v1064 = vmul.f32 %v990, %v1029
    %v1065 = vmul.f32 %v991, %v1033
    %v1066 = vmul.f32 %v992, %v1037
    %v1067 = vmul.f32 %v993, %v1041
    %v1068 = vmul.f32 %v994, %v1045
    %v1069 = vmul.f32 %v995, %v1049
    %v1070 = vmul.f32 %v996, %v1013
    %v1071 = vmul.f32 %v997, %v1017
    %v1072 = vmul.f32 %v998, %v1021
    %v1073 = vmul.f32 %v999, %v1025
    %v1074 = vmul.f32 %v1000, %v1029
    %v1075 = vmul.f32 %v1001, %v1033
    %v1076 = vmul.f32 %v1002, %v1037
    %v1077 = vmul.f32 %v1003, %v1041
    %v1078 = vmul.f32 %v1004, %v1045
    %v1079 = vmul.f32 %v1005, %v1049
    %v1080 = vadd.f32 %v1060, %v1061
    %v1081 = vadd.f32 %v1080, %v1062
    %v1082 = vadd.f32 %v1081, %v1063
    %v1083 = vadd.f32 %v1082, %v1064
    %v1084 = vadd.f32 %v1083, %v1065
    %v1085 = vadd.f32 %v1084, %v1066
    %v1086 = vadd.f32 %v1085, %v1067
    %v1087 = vadd.f32 %v1086, %v1068
    %v1088 = vadd.f32 %v1087, %v1069
    %1089 = vadd.xlane.f32.xlu0 %v1088
    %v1090 = vpop.xlane.xlu0 %1089
    %v1091 = vadd.f32 %v1070, %v1071
    %v1092 = vadd.f32 %v1091, %v1072
    %v1093 = vadd.f32 %v1092, %v1073
    %v1094 = vadd.f32 %v1093, %v1074
    %v1095 = vadd.f32 %v1094, %v1075
    %v1096 = vadd.f32 %v1095, %v1076
    %v1097 = vadd.f32 %v1096, %v1077
    %v1098 = vadd.f32 %v1097, %v1078
    %v1099 = vadd.f32 %v1098, %v1079
    %1100 = vadd.xlane.f32.xlu0 %v1099
    %v1101 = vpop.xlane.xlu0 %1100
    %v1102 = vmul.f32 %v983, %v1090
    %v1103 = vmul.f32 %v985, %v1101
    %v1106 = vlaneseq
    %v1107 = vand.u32 %v1106, 127
    %v1108 = vlaneseq
    %v1109 = vshrl.u32 %v1108, 7
    %v1110 = vsub.s32 %v1107, %v1109
    %v1111 = vrot.slane %v1102, %v1110
    %v1112 = vlaneseq
    %v1113 = vshrl.u32 %v1112, 7
    %v1114 = vsub.s32 %v1107, %v1113
    %v1115 = vrot.slane %v1103, %v1114
    %vm1116 = vcmask 1041409
    %v1117 = vsel %vm1116, %v1115, %v1111
    %vm1119 = vcmask 58368
    %v1120 = vsel %vm1119, %v1117, 0.0
    %1121 = vadd.xlane.f32.xlu0 %v1120
    %v1122 = vpop.xlane.xlu0 %1121
    %v1125 = vlaneseq
    %v1126 = vshrl.u32 %v1125, 7
    %v1127 = vsub.s32 %v1107, %v1126
    %v1128 = vrot.slane %v983, %v1127
    %v1129 = vlaneseq
    %v1130 = vshrl.u32 %v1129, 7
    %v1131 = vsub.s32 %v1107, %v1130
    %v1132 = vrot.slane %v985, %v1131
    %v1133 = vsel %vm1116, %v1132, %v1128
    %v1135 = vsel %vm1119, %v1133, 0.0
    %1136 = vadd.xlane.f32.xlu0 %v1135
    %v1137 = vpop.xlane.xlu0 %1136
    %v1138 = vrcp.pop %v1137
    %v1139 = vmul.f32 %v1122, %v1138
    %s1140 = sld [smem:[#allocation3]]
    %v1141 = vstv %s1140
    %v1142 = vadd.f32 %v1139, %v1141
    %vm1143 = vcmask 1024
    %1144 = vst.msk [vmem:[%s7] sm:$0x3] %vm1143, %v1142
    // Predicated region
    $region34: #{shapenet_graphclass_head.1} parent=1 // pred_check
      _
    $region35: #{shapenet_graphclass_head.1} parent=1 // pred_check_branch
      %1146 = sbr.rel (0) target = $region37
    $region36: #{shapenet_graphclass_head.1} parent=1 // pred_region
      _
    $region37: #{shapenet_graphclass_head.1} parent=1 // pred_fallthru
      _
    // Predicated region
    $region38: #{shapenet_graphclass_head.1} parent=1 // pred_check
      _
    $region39: #{shapenet_graphclass_head.1} parent=1 // pred_check_branch
      %1148 = sbr.rel (0) target = $region41
    $region40: #{shapenet_graphclass_head.1} parent=1 // pred_region
      _
    $region41: #{shapenet_graphclass_head.1} parent=1 // pred_fallthru
      _
    %1149 = vsyncpa [#allocation5], 1

</llo_original>
